<compile_context>
chip_gen: v5e
topology: v5e:2x2
jax: 0.10.0
libtpu: 0.0.40
codegen_flags: <defaults>
</compile_context>

<pallas_src>
import functools

import jax
import jax.numpy as jnp
from jax.experimental import pallas as pl
from jax.experimental.pallas import tpu as pltpu

LANES = 128
TARGET_BLOCK_BYTES = 2 * 1024 * 1024   # ~2 MiB per input stream per pipeline buffer


def _dtype_row_granularity(dtype):
    # Sublane packing: 4-byte dtypes tile (8,128), 2-byte (16,128), 1-byte (32,128).
    itemsize = jnp.dtype(dtype).itemsize
    return max(8, 32 // max(int(itemsize), 1))


def _focal_elements(p, t, *, alpha, gamma, hard_targets):
    """Per-element focal loss in f32 (used both inside the kernel and for the tail)."""
    p = p.astype(jnp.float32)
    t = t.astype(jnp.float32)
    if hard_targets:
        # Exact 0/1 labels only.  Note: if the -100 clamp fires, pt is exactly 0 here
        # instead of exp(-100) ~= 3.7e-44 in the reference path -- negligible.
        pt = jnp.where(t >= 0.5, p, 1.0 - p)
        bce = -jnp.maximum(jnp.log(pt), -100.0)
    else:
        # PyTorch F.binary_cross_entropy clamps log terms at -100.
        log_p = jnp.maximum(jnp.log(p), -100.0)
        log_1mp = jnp.maximum(jnp.log(1.0 - p), -100.0)
        bce = -(t * log_p + (1.0 - t) * log_1mp)
        pt = jnp.exp(-bce)
    one_m_pt = 1.0 - pt
    # Integer-power fast path (gamma=2 default): repeated multiply instead of
    # float pow (which lowers to exp(gamma*log(x)) on the EUP).
    if float(gamma) == int(gamma) and 0 <= int(gamma) <= 8:
        g = int(gamma)
        if g == 0:
            mod = jnp.ones_like(one_m_pt)
        else:
            mod = one_m_pt
            for _ in range(g - 1):
                mod = mod * one_m_pt
    else:
        mod = one_m_pt ** gamma
    f = mod * bce
    if alpha != 1.0:
        f = f * alpha
    return f


def _focal_sum_kernel(p_ref, t_ref, out_ref, *, alpha, gamma, rows, row_blk,
                      blocks_per_core, edge_start, hard_targets, two_axis):
    if two_axis:
        i = pl.program_id(1)                       # reduction axis
        gb = pl.program_id(0) * blocks_per_core + i  # global (intended) block index
    else:
        i = pl.program_id(0)
        gb = i

    @pl.when(i == 0)
    def _():
        out_ref[...] = jnp.zeros_like(out_ref)

    p = p_ref[...].astype(jnp.float32)
    t = t_ref[...].astype(jnp.float32)

    def accumulate(pp, tt):
        f = _focal_elements(pp, tt, alpha=alpha, gamma=gamma,
                            hard_targets=hard_targets)
        # VPU-only partial reduction: fold (row_blk,128) -> resident (8,128) output.
        out_ref[...] += f.reshape(-1, 8, LANES).sum(axis=0)

    if edge_start is None:
        accumulate(p, t)
    else:
        # Interior blocks: no per-element masking.
        @pl.when(gb < edge_start)
        def _():
            accumulate(p, t)

        # Final ragged block and/or overflow iterations from the core split:
        # out-of-range rows get p=1, t=1, which contribute exactly 0 to the loss.
        @pl.when(gb >= edge_start)
        def _():
            row_ids = gb * row_blk + jax.lax.broadcasted_iota(jnp.int32, p.shape, 0)
            valid = row_ids < rows
            accumulate(jnp.where(valid, p, 1.0), jnp.where(valid, t, 1.0))


def _launch(p2, t2, *, rows, row_blk, total_blocks, n_split, core_parallel,
            alpha, gamma, hard_targets):
    bpc = pl.cdiv(total_blocks, n_split)             # blocks per core
    two_axis = n_split > 1
    ragged = (rows % row_blk) != 0
    overflow = (n_split * bpc) != total_blocks
    if ragged or overflow:
        edge_start = total_blocks - 1 if ragged else total_blocks
    else:
        edge_start = None

    if two_axis:
        if overflow:
            def in_map(c, i):
                # Keep DMAs in-bounds on overflow iterations; the row mask zeroes them.
                return (jnp.minimum(c * bpc + i, total_blocks - 1), 0)
        else:
            def in_map(c, i):
                return (c * bpc + i, 0)
        out_map = lambda c, i: (c, 0)
        grid = (n_split, bpc)
        semantics = (pltpu.CORE_PARALLEL if core_parallel else pltpu.PARALLEL,
                     pltpu.ARBITRARY)
    else:
        in_map = lambda i: (i, 0)
        out_map = lambda i: (0, 0)
        grid = (total_blocks,)
        semantics = (pltpu.ARBITRARY,)

    kernel = functools.partial(
        _focal_sum_kernel,
        alpha=float(alpha), gamma=float(gamma), rows=rows, row_blk=row_blk,
        blocks_per_core=bpc, edge_start=edge_start,
        hard_targets=bool(hard_targets), two_axis=two_axis)

    return pl.pallas_call(
        kernel,
        out_shape=jax.ShapeDtypeStruct((n_split * 8, LANES), jnp.float32),
        grid_spec=pltpu.PrefetchScalarGridSpec(
            num_scalar_prefetch=0,
            grid=grid,
            in_specs=[pl.BlockSpec((row_blk, LANES), in_map),
                      pl.BlockSpec((row_blk, LANES), in_map)],
            out_specs=pl.BlockSpec((8, LANES), out_map),
        ),
        compiler_params=pltpu.CompilerParams(dimension_semantics=semantics),
    )(p2, t2)


def focal_loss(inputs, targets, *, alpha=1.0, gamma=2.0, hard_targets=False,
               block_rows=None):
    """Mean focal loss over all elements. inputs/targets: same shape, probs in [0,1]."""
    assert inputs.shape == targets.shape
    n_elems = inputs.size

    # NOTE: reshape(-1) is copy-free only for contiguous inputs; a transposed /
    # strided input silently adds one HBM copy here (still correct).
    flat_p = inputs.reshape(-1)
    flat_t = targets.reshape(-1)

    # Row (sublane) granularity so narrow-dtype (bf16 / int8 / bool) tiles stay aligned.
    gran = max(_dtype_row_granularity(flat_p.dtype),
               _dtype_row_granularity(flat_t.dtype))

    rows = (n_elems // (gran * LANES)) * gran         # rows handled by the kernel
    n_main = rows * LANES
    n_tail = n_elems - n_main                         # < gran*128 elements, JAX glue

    total = jnp.zeros((), jnp.float32)

    if rows > 0:
        p2 = flat_p[:n_main].reshape(rows, LANES)     # static prefix slice, no pad copy
        t2 = flat_t[:n_main].reshape(rows, LANES)

        # Block sizing: as large as possible (~2 MiB per stream), multiple of gran.
        if block_rows is None:
            max_itemsize = max(jnp.dtype(flat_p.dtype).itemsize,
                               jnp.dtype(flat_t.dtype).itemsize, 1)
            block_rows = max(
                gran,
                (TARGET_BLOCK_BYTES // (LANES * int(max_itemsize))) // gran * gran)
        row_blk = min(rows, (int(block_rows) // gran) * gran)
        row_blk = max(row_blk, gran)
        total_blocks = pl.cdiv(rows, row_blk)

        # Split blocks across TensorCores only on 2-TC chips (v7x); single-TC chips
        # (v5e/v6e) use a flat grid (no mask, no clamped index_map).
        kind = jax.devices()[0].device_kind.lower()
        two_tc = ("v7" in kind) or ("7x" in kind)
        launch = functools.partial(
            _launch, p2, t2, rows=rows, row_blk=row_blk, total_blocks=total_blocks,
            alpha=alpha, gamma=gamma, hard_targets=hard_targets)
        if two_tc and total_blocks >= 2:
            try:
                partial_sums = launch(n_split=2, core_parallel=True)
            except Exception:
                partial_sums = launch(n_split=1, core_parallel=False)
        else:
            partial_sums = launch(n_split=1, core_parallel=False)

        # Single cross-lane reduction in JAX glue (also better summation accuracy).
        total = total + jnp.sum(partial_sums)

    if n_tail > 0:
        total = total + jnp.sum(
            _focal_elements(flat_p[n_main:], flat_t[n_main:],
                            alpha=alpha, gamma=gamma, hard_targets=hard_targets))

    return (total / n_elems).astype(jnp.float32)


def focal_loss_ref(inputs, targets, *, alpha=1.0, gamma=2.0):
    p = inputs.astype(jnp.float32)
    t = targets.astype(jnp.float32)
    bce = -(t * jnp.maximum(jnp.log(p), -100.0)
            + (1.0 - t) * jnp.maximum(jnp.log(1.0 - p), -100.0))
    pt = jnp.exp(-bce)
    return jnp.mean(alpha * (1.0 - pt) ** gamma * bce)


if __name__ == "__main__":
    key = jax.random.PRNGKey(0)
    k1, k2, k3, k4 = jax.random.split(key, 4)

    # Test 1: NCHW probabilities + binary targets, 128-aligned (2*4*16*16 = 2048).
    x_shape = (2, 4, 16, 16)
    inputs = jax.nn.sigmoid(jax.random.normal(k1, x_shape, jnp.float32))
    targets = (jax.random.uniform(k2, x_shape) > 0.5).astype(jnp.float32)
    out = focal_loss(inputs, targets)
    jax.block_until_ready(out)
    ref = focal_loss_ref(inputs, targets)
    assert jnp.allclose(out, ref, rtol=1e-5, atol=1e-6), (out, ref)

    # Test 2: misaligned element count -> kernel prefix + JAX-glue tail (no pad copy).
    y_shape = (2, 3, 17, 13)     # 1326 elements
    p_mis = jax.nn.sigmoid(jax.random.normal(k3, y_shape, jnp.float32))
    t_mis = (jax.random.uniform(k4, y_shape) > 0.5).astype(jnp.float32)
    out2 = focal_loss(p_mis, t_mis)
    jax.block_until_ready(out2)
    ref2 = focal_loss_ref(p_mis, t_mis)
    assert jnp.allclose(out2, ref2, rtol=1e-5, atol=1e-6), (out2, ref2)

    # Test 3: multi-block grid with a ragged last block (forced small block), plus
    # the single-log hard-target fast path.
    z_shape = (3, 8, 128)        # 24 rows of 128
    p3 = jax.nn.sigmoid(jax.random.normal(k1, z_shape, jnp.float32))
    t3 = (jax.random.uniform(k2, z_shape) > 0.5).astype(jnp.float32)
    out3 = focal_loss(p3, t3, block_rows=16)
    out3h = focal_loss(p3, t3, block_rows=16, hard_targets=True)
    jax.block_until_ready((out3, out3h))
    ref3 = focal_loss_ref(p3, t3)
    assert jnp.allclose(out3, ref3, rtol=1e-5, atol=1e-6), (out3, ref3)
    assert jnp.allclose(out3h, ref3, rtol=1e-4, atol=1e-6), (out3h, ref3)

    print("KERNEL_OK")
</pallas_src>

<mosaic_0001>
module attributes {stable_mosaic.version = 11 : i64} {
  func.func @_focal_sum_kernel(%arg0: i32, %arg1: memref<16x128xf32, #tpu.memory_space<vmem>>, %arg2: memref<16x128xf32, #tpu.memory_space<vmem>>, %arg3: memref<8x128xf32, #tpu.memory_space<vmem>>) attributes {dimension_semantics = [#tpu.dimension_semantics<arbitrary>], iteration_bounds = array<i64: 1>, scalar_prefetch = 0 : i64, scratch_operands = 0 : i64, tpu.core_type = #tpu.core_type<tc>, window_params = [{transform_indices = @transform_0, window_bounds = array<i64: 16, 128>}, {transform_indices = @transform_1, window_bounds = array<i64: 16, 128>}, {pipeline_mode = #tpu.pipeline_mode<synchronous>, transform_indices = @transform_2, window_bounds = array<i64: 8, 128>}]} {
    %c0_i32 = arith.constant 0 : i32
    %0 = arith.cmpi eq, %arg0, %c0_i32 : i32
    %1 = arith.extui %0 : i1 to i32
    %c0_i32_0 = arith.constant 0 : i32
    %2 = arith.cmpi ne, %1, %c0_i32_0 : i32
    scf.if %2 {
      %cst_15 = arith.constant 0.000000e+00 : f32
      %32 = vector.broadcast %cst_15 : f32 to vector<8x128xf32>
      %c0_16 = arith.constant 0 : index
      %c0_17 = arith.constant 0 : index
      %33 = vector.load %arg3[%c0_16, %c0_17] : memref<8x128xf32, #tpu.memory_space<vmem>>, vector<8x128xf32>
      tpu.vector_store %arg3[%c0_16, %c0_17], %32 {strides = array<i32>} : memref<8x128xf32, #tpu.memory_space<vmem>>, vector<8x128xf32>,
    } else {
    }
    %c0 = arith.constant 0 : index
    %c0_1 = arith.constant 0 : index
    %3 = vector.load %arg1[%c0, %c0_1] : memref<16x128xf32, #tpu.memory_space<vmem>>, vector<16x128xf32>
    %c0_2 = arith.constant 0 : index
    %c0_3 = arith.constant 0 : index
    %4 = vector.load %arg2[%c0_2, %c0_3] : memref<16x128xf32, #tpu.memory_space<vmem>>, vector<16x128xf32>
    %5 = math.log %3 : vector<16x128xf32>
    %cst = arith.constant -1.000000e+02 : f32
    %6 = vector.broadcast %cst : f32 to vector<16x128xf32>
    %7 = arith.maximumf %5, %6 : vector<16x128xf32>
    %cst_4 = arith.constant 1.000000e+00 : f32
    %8 = vector.broadcast %cst_4 : f32 to vector<16x128xf32>
    %9 = arith.subf %8, %3 : vector<16x128xf32>
    %10 = math.log %9 : vector<16x128xf32>
    %cst_5 = arith.constant -1.000000e+02 : f32
    %11 = vector.broadcast %cst_5 : f32 to vector<16x128xf32>
    %12 = arith.maximumf %10, %11 : vector<16x128xf32>
    %13 = arith.mulf %4, %7 : vector<16x128xf32>
    %cst_6 = arith.constant 1.000000e+00 : f32
    %14 = vector.broadcast %cst_6 : f32 to vector<16x128xf32>
    %15 = arith.subf %14, %4 : vector<16x128xf32>
    %16 = arith.mulf %15, %12 : vector<16x128xf32>
    %17 = arith.addf %13, %16 : vector<16x128xf32>
    %cst_7 = arith.constant 0.000000e+00 : f32
    %18 = vector.broadcast %cst_7 : f32 to vector<16x128xf32>
    %19 = arith.subf %18, %17 : vector<16x128xf32>
    %cst_8 = arith.constant 0.000000e+00 : f32
    %20 = vector.broadcast %cst_8 : f32 to vector<16x128xf32>
    %21 = arith.subf %20, %19 : vector<16x128xf32>
    %22 = math.exp %21 : vector<16x128xf32>
    %cst_9 = arith.constant 1.000000e+00 : f32
    %23 = vector.broadcast %cst_9 : f32 to vector<16x128xf32>
    %24 = arith.subf %23, %22 : vector<16x128xf32>
    %25 = arith.mulf %24, %24 : vector<16x128xf32>
    %26 = arith.mulf %25, %19 : vector<16x128xf32>
    %c0_10 = arith.constant 0 : index
    %c0_11 = arith.constant 0 : index
    %27 = vector.load %arg3[%c0_10, %c0_11] : memref<8x128xf32, #tpu.memory_space<vmem>>, vector<8x128xf32>
    %28 = vector.shape_cast %26 : vector<16x128xf32> to vector<2x8x128xf32>
    %cst_12 = arith.constant dense<0.000000e+00> : vector<8x128xf32>
    %29 = vector.multi_reduction <add>, %28, %cst_12 [0] : vector<2x8x128xf32> to vector<8x128xf32>
    %30 = arith.addf %27, %29 : vector<8x128xf32>
    %c0_13 = arith.constant 0 : index
    %c0_14 = arith.constant 0 : index
    %31 = vector.load %arg3[%c0_13, %c0_14] : memref<8x128xf32, #tpu.memory_space<vmem>>, vector<8x128xf32>
    tpu.vector_store %arg3[%c0_13, %c0_14], %30 {strides = array<i32>} : memref<8x128xf32, #tpu.memory_space<vmem>>, vector<8x128xf32>,
    return
  }
  func.func @transform_0(%arg0: i32) -> (i32, i32) {
    %c0_i32 = arith.constant 0 : i32
    %c0_i32_0 = arith.constant 0 : i32
    return %arg0, %c0_i32 : i32, i32
  }
  func.func @transform_1(%arg0: i32) -> (i32, i32) {
    %c0_i32 = arith.constant 0 : i32
    %c0_i32_0 = arith.constant 0 : i32
    return %arg0, %c0_i32 : i32, i32
  }
  func.func @transform_2(%arg0: i32) -> (i32, i32) {
    %c0_i32 = arith.constant 0 : i32
    %c0_i32_0 = arith.constant 0 : i32
    %c0_i32_1 = arith.constant 0 : i32
    return %c0_i32, %c0_i32_0 : i32, i32
  }
}

</mosaic_0001>

<llo_original>
// kernel: tpu_custom_call.1
$region0: #{tpu_custom_call.1}
  #allocation0 [shape = 'u32[]', space=smem, size = 0x4, offset = 0x4, fixed_abs, tag = 'smem constant byte address 0x4 - core index']
  #allocation1 [shape = 'u32[72,128]{1,0:T(1,128)}', space=vmem, size = 0x9000, scoped, tag = 'internal scratch']
  %s0 = inlined_call_operand.hbm [shape: f32[16,128], index: 0, kind: input, shape index: {}]
  %s1 = inlined_call_operand.hbm [shape: f32[16,128], index: 1, kind: input, shape index: {}]
  %s2 = inlined_call_operand.hbm [shape: f32[8,128], index: 2, kind: output, shape index: {}]
  %s3 = sld [smem:[#allocation0]]
  $region30: #{tpu_custom_call.1} parent=0
    _
  %s5 = ssub.s32 1, %s3
  %s6 = scalar_select 0, %s5, %s3
  $region1: #{tpu_custom_call.1} parent=0
    #allocation2 [shape = 'u8[8192]{0}', space=vmem, size = 0x2000, scoped, tag = 'input window, operand 0, single buffered']
    #allocation3 [shape = 's32[1]{0}', space=sflag, size = 0x4, scoped, tag = 'scoped memory for tpu_custom_call.1']
    #allocation4 [shape = 's32[1]{0}', space=sflag, size = 0x4, scoped, tag = 'scoped memory for tpu_custom_call.1']
    #allocation5 [shape = 'u8[8192]{0}', space=vmem, size = 0x2000, scoped, tag = 'input window, operand 1, single buffered']
    #allocation6 [shape = 's32[1]{0}', space=sflag, size = 0x4, scoped, tag = 'scoped memory for tpu_custom_call.1']
    #allocation7 [shape = 'u8[4096]{0}', space=vmem, size = 0x1000, scoped, tag = 'output window, operand 0, single buffered']
    %7 = vsyncpa [#allocation3], 0
    %8 = vsyncpa [#allocation6], 0
    %9 = vsyncpa [#allocation4], 0
    // Predicated region
    $region2: #{tpu_custom_call.1} parent=1 // pred_check
      _
    $region3: #{tpu_custom_call.1} parent=1 // pred_check_branch
      %11 = sbr.rel (0) target = $region5
    $region4: #{tpu_custom_call.1} parent=1 // pred_region
      %13 = vsyncadd [#allocation3], 0
      %s14 = sshll.u32 %s0, 4
      %s15 = int_to_ptr.hbm [resolvable:$true] %s14
      %s16 = sshll.u32 [#allocation2], 4
      %s17 = int_to_ptr.vmem [resolvable:$true] %s16
      %22 = dma.hbm_to_vmem [thread:$0]  %s15, 256, %s17, [#allocation3], 128, 128, 8
    $region5: #{tpu_custom_call.1} parent=1 // pred_fallthru
      _
    // Predicated region
    $region6: #{tpu_custom_call.1} parent=1 // pred_check
      _
    $region7: #{tpu_custom_call.1} parent=1 // pred_check_branch
      %24 = sbr.rel (0) target = $region9
    $region8: #{tpu_custom_call.1} parent=1 // pred_region
      %26 = vsyncadd [#allocation6], 0
      %s27 = sshll.u32 %s1, 4
      %s28 = int_to_ptr.hbm [resolvable:$true] %s27
      %s29 = sshll.u32 [#allocation5], 4
      %s30 = int_to_ptr.vmem [resolvable:$true] %s29
      %35 = dma.hbm_to_vmem [thread:$0]  %s28, 256, %s30, [#allocation6], 128, 128, 8
    $region9: #{tpu_custom_call.1} parent=1 // pred_fallthru
      _
    // Predicated region
    $region10: #{tpu_custom_call.1} parent=1 // pred_check
      _
    $region11: #{tpu_custom_call.1} parent=1 // pred_check_branch
      %37 = sbr.rel (0) target = $region13
    $region12: #{tpu_custom_call.1} parent=1 // pred_region
      %39 = dma.done [#allocation3], 256
    $region13: #{tpu_custom_call.1} parent=1 // pred_fallthru
      _
    // Predicated region
    $region14: #{tpu_custom_call.1} parent=1 // pred_check
      _
    $region15: #{tpu_custom_call.1} parent=1 // pred_check_branch
      %41 = sbr.rel (0) target = $region17
    $region16: #{tpu_custom_call.1} parent=1 // pred_region
      %43 = dma.done [#allocation6], 256
    $region17: #{tpu_custom_call.1} parent=1 // pred_fallthru
      _
    %p44 = scmp.eq.s32.totalorder 0, 0
    // Predicated region
    $region18: #{tpu_custom_call.1} parent=1 // pred_check
      %p45 = pneg %p44
    $region19: #{tpu_custom_call.1} parent=1 // pred_check_branch
      %47 = sbr.rel (%p45) target = $region21
    $region20: #{tpu_custom_call.1} parent=1 // pred_region
      %48 = vst [vmem:[#allocation7] sm:$0xff] 0.0
    $region21: #{tpu_custom_call.1} parent=1 // pred_fallthru
      _
    %v49 = vld [vmem:[#allocation2] sm:$0xff]
    %v50 = vld [vmem:[#allocation2 + $0x8] sm:$0xff]
    %v51 = vld [vmem:[#allocation5] sm:$0xff]
    %v52 = vld [vmem:[#allocation5 + $0x8] sm:$0xff]
    %v53 = vlog2.pop %v49
    %v54 = vmul.f32 %v53, 0.6931472
    %v55 = vlog2.pop %v50
    %v56 = vmul.f32 %v55, 0.6931472
    %v57 = vmax.f32 %v54, -100.0
    %v58 = vmax.f32 %v56, -100.0
    %v59 = vsub.f32 1.0, %v49
    %v60 = vsub.f32 1.0, %v50
    %v61 = vlog2.pop %v59
    %v62 = vmul.f32 %v61, 0.6931472
    %v63 = vlog2.pop %v60
    %v64 = vmul.f32 %v63, 0.6931472
    %v65 = vmax.f32 %v62, -100.0
    %v66 = vmax.f32 %v64, -100.0
    %v67 = vmul.f32 %v51, %v57
    %v68 = vmul.f32 %v52, %v58
    %v69 = vsub.f32 1.0, %v51
    %v70 = vsub.f32 1.0, %v52
    %v71 = vmul.f32 %v69, %v65
    %v72 = vmul.f32 %v70, %v66
    %v73 = vadd.f32 %v67, %v71
    %v74 = vadd.f32 %v68, %v72
    %v75 = vsub.f32 0.0, %v73
    %v76 = vsub.f32 0.0, %v74
    %v77 = vsub.f32 0.0, %v75
    %v78 = vsub.f32 0.0, %v76
    %v79 = vmul.f32 %v77, 1.442695
    %v80 = vpow.pop %v79
    %v81 = vmul.f32 %v78, 1.442695
    %v82 = vpow.pop %v81
    %v83 = vsub.f32 1.0, %v80
    %v84 = vsub.f32 1.0, %v82
    %v85 = vmul.f32 %v83, %v83
    %v86 = vmul.f32 %v84, %v84
    %v87 = vmul.f32 %v85, %v75
    %v88 = vmul.f32 %v86, %v76
    %v89 = vld [vmem:[#allocation7] sm:$0xff]
    %v90 = vadd.f32 %v87, %v88
    %v91 = vadd.f32 %v89, %v90
    %92 = vst [vmem:[#allocation7] sm:$0xff] %v91
    // Predicated region
    $region22: #{tpu_custom_call.1} parent=1 // pred_check
      _
    $region23: #{tpu_custom_call.1} parent=1 // pred_check_branch
      %94 = sbr.rel (0) target = $region25
    $region24: #{tpu_custom_call.1} parent=1 // pred_region
      %96 = vsyncadd [#allocation4], 0
      %s98 = sshll.u32 [#allocation7], 4
      %s99 = int_to_ptr.vmem [resolvable:$true] %s98
      %s100 = sshll.u32 %s2, 4
      %s101 = int_to_ptr.hbm [resolvable:$true] %s100
      %103 = dma.vmem_to_hbm [thread:$0]  %s99, 128, %s101, [#allocation4]
    $region25: #{tpu_custom_call.1} parent=1 // pred_fallthru
      _
    // Predicated region
    $region26: #{tpu_custom_call.1} parent=1 // pred_check
      _
    $region27: #{tpu_custom_call.1} parent=1 // pred_check_branch
      %105 = sbr.rel (0) target = $region29
    $region28: #{tpu_custom_call.1} parent=1 // pred_region
      %107 = dma.done [#allocation4], 128
    $region29: #{tpu_custom_call.1} parent=1 // pred_fallthru
      _
    %108 = vsyncpa [#allocation3], 1
    %109 = vsyncpa [#allocation6], 1
    %110 = vsyncpa [#allocation4], 1

</llo_original>
